<compile_context>
chip_gen: v7x
topology: tpu7x:2x2x1
jax: 0.10.0
libtpu: 0.0.40
codegen_flags: <defaults>
</compile_context>

<pallas_src>
import jax
import jax.numpy as jnp
from jax.experimental import pallas as pl
from jax.experimental.pallas import tpu as pltpu

# ---------------------------------------------------------------------------
# Model configuration
# ---------------------------------------------------------------------------
INPUT_DIM = 32
K_LIST = [64, 32]
LATENT = K_LIST[-1] // 2          # 16

# packed layer table: (in_dim, out_dim)
#   0: enc-0   (32,64)+relu   1: enc-1 (64,32)+sigma   2: head (32,32) fused mu|logvar
#   3: -dec-0  (16,32)+relu   4: dec-0 (32,64)+relu    5: dec-1 (64,32)+sigma
_LAYERS = (
    (INPUT_DIM, K_LIST[0]),
    (K_LIST[0], K_LIST[1]),
    (K_LIST[1], 2 * LATENT),
    (LATENT, K_LIST[1]),
    (K_LIST[1], K_LIST[0]),
    (K_LIST[0], INPUT_DIM),
)
NUM_LAYERS = len(_LAYERS)
WPAD = 64                               # every layer dim <= 64: pad weights to (64,64)
IN_LANES = INPUT_DIM + LATENT           # 48  : [x(32) | eps(16)] input slab
OUT_LANES = 2 * LATENT + INPUT_DIM      # 64  : [mu(16) | logvar(16) | x_dec(32)]


# ---------------------------------------------------------------------------
# Pallas kernel: whole VAE forward for one batch tile
# ---------------------------------------------------------------------------
def vae_kernel(in_ref, w_ref, b_ref, out_ref):
    xe = in_ref[...]                      # (tb, 48) f32  [x | eps]
    x = xe[:, :INPUT_DIM]                 # (tb, 32)
    eps = xe[:, INPUT_DIM:]               # (tb, 16)
    biases = b_ref[...]                   # (6, 64)  f32 (tiny, VMEM-resident)

    def dense(h, layer):
        din, dout = _LAYERS[layer]
        w = w_ref[layer, :din, :dout]               # bf16, resident across grid steps
        b = biases[layer:layer + 1, :dout]          # (1, dout) f32
        y = jnp.dot(h.astype(jnp.bfloat16), w,
                    preferred_element_type=jnp.float32)
        return y + b

    def sigmoid(v):
        # exp + approximate reciprocal both run on the (otherwise idle) EUP slot.
        return pl.reciprocal(1.0 + jnp.exp(-v), approx=True)

    # ---- encoder ----
    h = jnp.maximum(dense(x, 0), 0.0)               # act-0: relu
    h = sigmoid(dense(h, 1))                        # act-1: sigma

    # ---- fused mu / logvar head (kept contiguous for the output slab) ----
    head = dense(h, 2)                              # (tb, 32) = [mu | logvar]
    mu = head[:, :LATENT]
    logvar = head[:, LATENT:]

    # ---- reparameterize: z = mu + eps * exp(0.5*logvar) ----
    # TODO(synk): clamp logvar before exp if this kernel is ever used in training
    z = mu + eps * jnp.exp(0.5 * logvar)

    # ---- decoder ----
    d = jnp.maximum(dense(z, 3), 0.0)               # -act-0: relu
    d = jnp.maximum(dense(d, 4), 0.0)               # act-0: relu
    x_dec = sigmoid(dense(d, 5))                    # act-1 (last): sigma

    # tight (tb, 64) f32 slab: head stays contiguous, single writeback per tile.
    # z is NOT written back (recomputed in the wrapper) -> half the HBM write bytes.
    out_ref[...] = jnp.concatenate([head, x_dec], axis=-1)


# ---------------------------------------------------------------------------
# Wrapper: batch-tiled pallas_call + output unpacking
# ---------------------------------------------------------------------------
def vae_forward(x, eps, w_packed, b_packed, *, block_b=512):
    batch = x.shape[0]

    # Tile choice: keep >= 8 grid steps when the batch allows (software pipelining
    # actually overlaps, and v7x's 2 TCs each get >= 4 steps), sublane-aligned.
    target_steps = 8
    bb = min(block_b, max(8, batch // target_steps))
    bb = max(8, (bb // 8) * 8)

    # Pad the batch to a multiple of the tile (preserves the tuned tile size for
    # ragged batches instead of collapsing the grid to one giant tile).
    padded = pl.cdiv(batch, bb) * bb

    # One lane-dense input slab [x | eps] -> single input DMA stream per step.
    xe = jnp.concatenate([x, eps], axis=-1)                  # (batch, 48)
    if padded != batch:
        xe = jnp.pad(xe, ((0, padded - batch), (0, 0)))

    grid = (padded // bb,)

    out = pl.pallas_call(
        vae_kernel,
        out_shape=jax.ShapeDtypeStruct((padded, OUT_LANES), jnp.float32),
        grid=grid,
        in_specs=[
            pl.BlockSpec((bb, IN_LANES), lambda i: (i, 0)),                # [x|eps] tile
            pl.BlockSpec((NUM_LAYERS, WPAD, WPAD), lambda i: (0, 0, 0)),   # weights (resident)
            pl.BlockSpec((NUM_LAYERS, WPAD), lambda i: (0, 0)),            # biases  (resident)
        ],
        out_specs=pl.BlockSpec((bb, OUT_LANES), lambda i: (i, 0)),
        compiler_params=pltpu.CompilerParams(
            dimension_semantics=("parallel",),       # megacore split on v7x
        ),
    )(xe, w_packed, b_packed)

    mu = out[:batch, :LATENT]
    logvar = out[:batch, LATENT:2 * LATENT]
    x_dec = out[:batch, 2 * LATENT:]
    # z recomputed here (3 cheap elementwise ops) using the same formula the kernel
    # used to feed the decoder -> identical values, half the kernel writeback.
    z = mu + eps * jnp.exp(0.5 * logvar)
    return z, mu, logvar, x_dec


# ---------------------------------------------------------------------------
# Parameter init (torch-equivalent shapes, [in, out] layout) + packing
# ---------------------------------------------------------------------------
def init_params(key):
    shapes = {
        "w_enc0": (INPUT_DIM, K_LIST[0]), "b_enc0": (K_LIST[0],),
        "w_enc1": (K_LIST[0], K_LIST[1]), "b_enc1": (K_LIST[1],),
        "w_mu": (K_LIST[1], LATENT),      "b_mu": (LATENT,),
        "w_sg": (K_LIST[1], LATENT),      "b_sg": (LATENT,),
        "w_dec0": (LATENT, K_LIST[1]),    "b_dec0": (K_LIST[1],),
        "w_dec1": (K_LIST[1], K_LIST[0]), "b_dec1": (K_LIST[0],),
        "w_dec2": (K_LIST[0], INPUT_DIM), "b_dec2": (INPUT_DIM,),
    }
    keys = jax.random.split(key, len(shapes))
    return {n: 0.1 * jax.random.normal(k, s, dtype=jnp.float32)
            for (n, s), k in zip(shapes.items(), keys)}


def pack_params(p):
    # fuse mu / sigma heads into one (32, 32) weight -> single MXU push
    w_head = jnp.concatenate([p["w_mu"], p["w_sg"]], axis=1)
    b_head = jnp.concatenate([p["b_mu"], p["b_sg"]], axis=0)
    layers = [
        (p["w_enc0"], p["b_enc0"]),
        (p["w_enc1"], p["b_enc1"]),
        (w_head, b_head),
        (p["w_dec0"], p["b_dec0"]),
        (p["w_dec1"], p["b_dec1"]),
        (p["w_dec2"], p["b_dec2"]),
    ]
    w_packed = jnp.zeros((NUM_LAYERS, WPAD, WPAD), jnp.bfloat16)
    b_packed = jnp.zeros((NUM_LAYERS, WPAD), jnp.float32)
    for i, (w, b) in enumerate(layers):
        din, dout = _LAYERS[i]
        w_packed = w_packed.at[i, :din, :dout].set(w.astype(jnp.bfloat16))
        b_packed = b_packed.at[i, :dout].set(b)
    return w_packed, b_packed


# ---------------------------------------------------------------------------
# Pure-JAX reference (f32) for a sanity check
# ---------------------------------------------------------------------------
def vae_reference(x, eps, p):
    h = jax.nn.relu(x @ p["w_enc0"] + p["b_enc0"])
    h = jax.nn.sigmoid(h @ p["w_enc1"] + p["b_enc1"])
    mu = h @ p["w_mu"] + p["b_mu"]
    logvar = h @ p["w_sg"] + p["b_sg"]
    z = mu + eps * jnp.exp(0.5 * logvar)
    d = jax.nn.relu(z @ p["w_dec0"] + p["b_dec0"])
    d = jax.nn.relu(d @ p["w_dec1"] + p["b_dec1"])
    x_dec = jax.nn.sigmoid(d @ p["w_dec2"] + p["b_dec2"])
    return z, mu, logvar, x_dec


def _check(batch, keys, params, w_packed, b_packed):
    k_x, k_eps = keys
    x = jax.random.normal(k_x, (batch, INPUT_DIM), dtype=jnp.float32)
    eps = jax.random.normal(k_eps, (batch, LATENT), dtype=jnp.float32)

    z, mu, logvar, x_dec = vae_forward(x, eps, w_packed, b_packed)
    jax.block_until_ready((z, mu, logvar, x_dec))

    assert z.shape == (batch, LATENT)
    assert mu.shape == (batch, LATENT)
    assert logvar.shape == (batch, LATENT)
    assert x_dec.shape == (batch, INPUT_DIM)

    # loose tolerance: kernel uses bf16 matmul inputs + approximate-reciprocal sigmoid
    z_r, mu_r, lv_r, xd_r = vae_reference(x, eps, params)
    for got, ref in ((z, z_r), (mu, mu_r), (logvar, lv_r), (x_dec, xd_r)):
        err = float(jnp.max(jnp.abs(got - ref)))
        assert err < 0.1, f"max abs err {err}"


if __name__ == "__main__":
    key = jax.random.PRNGKey(0)
    k_x, k_eps, k_p, k_x2, k_eps2 = jax.random.split(key, 5)

    params = init_params(k_p)
    w_packed, b_packed = pack_params(params)

    # batch=256 -> 32-row tiles, grid=(8,) : pipelined + v7x 2-TC split
    _check(256, (k_x, k_eps), params, w_packed, b_packed)
    # ragged batch -> exercises wrapper-side padding path (tile size preserved)
    _check(50, (k_x2, k_eps2), params, w_packed, b_packed)

    print("KERNEL_OK")
</pallas_src>

<mosaic_0001>
module attributes {stable_mosaic.version = 11 : i64} {
  func.func @vae_kernel(%arg0: i32, %arg1: memref<32x48xf32, #tpu.memory_space<vmem>>, %arg2: memref<6x64x64xbf16, #tpu.memory_space<vmem>>, %arg3: memref<6x64xf32, #tpu.memory_space<vmem>>, %arg4: memref<32x64xf32, #tpu.memory_space<vmem>>) attributes {dimension_semantics = [#tpu.dimension_semantics<parallel>], iteration_bounds = array<i64: 8>, scalar_prefetch = 0 : i64, scratch_operands = 0 : i64, tpu.core_type = #tpu.core_type<tc>, window_params = [{transform_indices = @transform_0, window_bounds = array<i64: 32, 48>}, {pipeline_mode = #tpu.pipeline_mode<synchronous>, transform_indices = @transform_1, window_bounds = array<i64: 6, 64, 64>}, {pipeline_mode = #tpu.pipeline_mode<synchronous>, transform_indices = @transform_2, window_bounds = array<i64: 6, 64>}, {transform_indices = @transform_3, window_bounds = array<i64: 32, 64>}]} {
    %c0 = arith.constant 0 : index
    %c0_0 = arith.constant 0 : index
    %0 = vector.load %arg1[%c0, %c0_0] : memref<32x48xf32, #tpu.memory_space<vmem>>, vector<32x48xf32>
    %1 = vector.extract_strided_slice %0 {offsets = [0, 0], sizes = [32, 32], strides = [1, 1]} : vector<32x48xf32> to vector<32x32xf32>
    %2 = vector.extract_strided_slice %0 {offsets = [0, 32], sizes = [32, 16], strides = [1, 1]} : vector<32x48xf32> to vector<32x16xf32>
    %c0_1 = arith.constant 0 : index
    %c0_2 = arith.constant 0 : index
    %3 = vector.load %arg3[%c0_1, %c0_2] : memref<6x64xf32, #tpu.memory_space<vmem>>, vector<6x64xf32>
    %c0_3 = arith.constant 0 : index
    %c0_4 = arith.constant 0 : index
    %c0_5 = arith.constant 0 : index
    %4 = vector.load %arg2[%c0_3, %c0_4, %c0_5] : memref<6x64x64xbf16, #tpu.memory_space<vmem>>, vector<1x32x64xbf16>
    %5 = vector.shape_cast %4 : vector<1x32x64xbf16> to vector<32x64xbf16>
    %6 = vector.extract_strided_slice %3 {offsets = [0, 0], sizes = [1, 64], strides = [1, 1]} : vector<6x64xf32> to vector<1x64xf32>
    %7 = arith.truncf %1 : vector<32x32xf32> to vector<32x32xbf16>
    %cst = arith.constant dense<0.000000e+00> : vector<32x64xf32>
    %8 = tpu.matmul %7, %5, %cst {dimension_numbers = #tpu.dot_dimension_numbers<[1], [0], [0], [1], [0, 0, 1, 1], [], []>} : vector<32x32xbf16>, vector<32x64xbf16>, vector<32x64xf32> -> vector<32x64xf32>
    %9 = vector.broadcast %6 : vector<1x64xf32> to vector<32x64xf32>
    %10 = arith.addf %8, %9 : vector<32x64xf32>
    %cst_6 = arith.constant 0.000000e+00 : f32
    %11 = vector.broadcast %cst_6 : f32 to vector<32x64xf32>
    %12 = arith.maximumf %10, %11 : vector<32x64xf32>
    %c1 = arith.constant 1 : index
    %c0_7 = arith.constant 0 : index
    %c0_8 = arith.constant 0 : index
    %13 = vector.load %arg2[%c1, %c0_7, %c0_8] : memref<6x64x64xbf16, #tpu.memory_space<vmem>>, vector<1x64x32xbf16>
    %14 = vector.shape_cast %13 : vector<1x64x32xbf16> to vector<64x32xbf16>
    %15 = vector.extract_strided_slice %3 {offsets = [1, 0], sizes = [1, 32], strides = [1, 1]} : vector<6x64xf32> to vector<1x32xf32>
    %16 = arith.truncf %12 : vector<32x64xf32> to vector<32x64xbf16>
    %cst_9 = arith.constant dense<0.000000e+00> : vector<32x32xf32>
    %17 = tpu.matmul %16, %14, %cst_9 {dimension_numbers = #tpu.dot_dimension_numbers<[1], [0], [0], [1], [0, 0, 1, 1], [], []>} : vector<32x64xbf16>, vector<64x32xbf16>, vector<32x32xf32> -> vector<32x32xf32>
    %18 = vector.broadcast %15 : vector<1x32xf32> to vector<32x32xf32>
    %19 = arith.addf %17, %18 : vector<32x32xf32>
    %cst_10 = arith.constant 0.000000e+00 : f32
    %20 = vector.broadcast %cst_10 : f32 to vector<32x32xf32>
    %21 = arith.subf %20, %19 : vector<32x32xf32>
    %22 = math.exp %21 : vector<32x32xf32>
    %cst_11 = arith.constant 1.000000e+00 : f32
    %23 = vector.broadcast %cst_11 : f32 to vector<32x32xf32>
    %24 = arith.addf %23, %22 : vector<32x32xf32>
    %25 = tpu.reciprocal %24 {approx = true} : vector<32x32xf32> -> vector<32x32xf32>
    %c2 = arith.constant 2 : index
    %c0_12 = arith.constant 0 : index
    %c0_13 = arith.constant 0 : index
    %26 = vector.load %arg2[%c2, %c0_12, %c0_13] : memref<6x64x64xbf16, #tpu.memory_space<vmem>>, vector<1x32x32xbf16>
    %27 = vector.shape_cast %26 : vector<1x32x32xbf16> to vector<32x32xbf16>
    %28 = vector.extract_strided_slice %3 {offsets = [2, 0], sizes = [1, 32], strides = [1, 1]} : vector<6x64xf32> to vector<1x32xf32>
    %29 = arith.truncf %25 : vector<32x32xf32> to vector<32x32xbf16>
    %cst_14 = arith.constant dense<0.000000e+00> : vector<32x32xf32>
    %30 = tpu.matmul %29, %27, %cst_14 {dimension_numbers = #tpu.dot_dimension_numbers<[1], [0], [0], [1], [0, 0, 1, 1], [], []>} : vector<32x32xbf16>, vector<32x32xbf16>, vector<32x32xf32> -> vector<32x32xf32>
    %31 = vector.broadcast %28 : vector<1x32xf32> to vector<32x32xf32>
    %32 = arith.addf %30, %31 : vector<32x32xf32>
    %33 = vector.extract_strided_slice %32 {offsets = [0, 0], sizes = [32, 16], strides = [1, 1]} : vector<32x32xf32> to vector<32x16xf32>
    %34 = vector.extract_strided_slice %32 {offsets = [0, 16], sizes = [32, 16], strides = [1, 1]} : vector<32x32xf32> to vector<32x16xf32>
    %cst_15 = arith.constant 5.000000e-01 : f32
    %35 = vector.broadcast %cst_15 : f32 to vector<32x16xf32>
    %36 = arith.mulf %35, %34 : vector<32x16xf32>
    %37 = math.exp %36 : vector<32x16xf32>
    %38 = arith.mulf %2, %37 : vector<32x16xf32>
    %39 = arith.addf %33, %38 : vector<32x16xf32>
    %c3 = arith.constant 3 : index
    %c0_16 = arith.constant 0 : index
    %c0_17 = arith.constant 0 : index
    %40 = vector.load %arg2[%c3, %c0_16, %c0_17] : memref<6x64x64xbf16, #tpu.memory_space<vmem>>, vector<1x16x32xbf16>
    %41 = vector.shape_cast %40 : vector<1x16x32xbf16> to vector<16x32xbf16>
    %42 = vector.extract_strided_slice %3 {offsets = [3, 0], sizes = [1, 32], strides = [1, 1]} : vector<6x64xf32> to vector<1x32xf32>
    %43 = arith.truncf %39 : vector<32x16xf32> to vector<32x16xbf16>
    %cst_18 = arith.constant dense<0.000000e+00> : vector<32x32xf32>
    %44 = tpu.matmul %43, %41, %cst_18 {dimension_numbers = #tpu.dot_dimension_numbers<[1], [0], [0], [1], [0, 0, 1, 1], [], []>} : vector<32x16xbf16>, vector<16x32xbf16>, vector<32x32xf32> -> vector<32x32xf32>
    %45 = vector.broadcast %42 : vector<1x32xf32> to vector<32x32xf32>
    %46 = arith.addf %44, %45 : vector<32x32xf32>
    %cst_19 = arith.constant 0.000000e+00 : f32
    %47 = vector.broadcast %cst_19 : f32 to vector<32x32xf32>
    %48 = arith.maximumf %46, %47 : vector<32x32xf32>
    %c4 = arith.constant 4 : index
    %c0_20 = arith.constant 0 : index
    %c0_21 = arith.constant 0 : index
    %49 = vector.load %arg2[%c4, %c0_20, %c0_21] : memref<6x64x64xbf16, #tpu.memory_space<vmem>>, vector<1x32x64xbf16>
    %50 = vector.shape_cast %49 : vector<1x32x64xbf16> to vector<32x64xbf16>
    %51 = vector.extract_strided_slice %3 {offsets = [4, 0], sizes = [1, 64], strides = [1, 1]} : vector<6x64xf32> to vector<1x64xf32>
    %52 = arith.truncf %48 : vector<32x32xf32> to vector<32x32xbf16>
    %cst_22 = arith.constant dense<0.000000e+00> : vector<32x64xf32>
    %53 = tpu.matmul %52, %50, %cst_22 {dimension_numbers = #tpu.dot_dimension_numbers<[1], [0], [0], [1], [0, 0, 1, 1], [], []>} : vector<32x32xbf16>, vector<32x64xbf16>, vector<32x64xf32> -> vector<32x64xf32>
    %54 = vector.broadcast %51 : vector<1x64xf32> to vector<32x64xf32>
    %55 = arith.addf %53, %54 : vector<32x64xf32>
    %cst_23 = arith.constant 0.000000e+00 : f32
    %56 = vector.broadcast %cst_23 : f32 to vector<32x64xf32>
    %57 = arith.maximumf %55, %56 : vector<32x64xf32>
    %c5 = arith.constant 5 : index
    %c0_24 = arith.constant 0 : index
    %c0_25 = arith.constant 0 : index
    %58 = vector.load %arg2[%c5, %c0_24, %c0_25] : memref<6x64x64xbf16, #tpu.memory_space<vmem>>, vector<1x64x32xbf16>
    %59 = vector.shape_cast %58 : vector<1x64x32xbf16> to vector<64x32xbf16>
    %60 = vector.extract_strided_slice %3 {offsets = [5, 0], sizes = [1, 32], strides = [1, 1]} : vector<6x64xf32> to vector<1x32xf32>
    %61 = arith.truncf %57 : vector<32x64xf32> to vector<32x64xbf16>
    %cst_26 = arith.constant dense<0.000000e+00> : vector<32x32xf32>
    %62 = tpu.matmul %61, %59, %cst_26 {dimension_numbers = #tpu.dot_dimension_numbers<[1], [0], [0], [1], [0, 0, 1, 1], [], []>} : vector<32x64xbf16>, vector<64x32xbf16>, vector<32x32xf32> -> vector<32x32xf32>
    %63 = vector.broadcast %60 : vector<1x32xf32> to vector<32x32xf32>
    %64 = arith.addf %62, %63 : vector<32x32xf32>
    %cst_27 = arith.constant 0.000000e+00 : f32
    %65 = vector.broadcast %cst_27 : f32 to vector<32x32xf32>
    %66 = arith.subf %65, %64 : vector<32x32xf32>
    %67 = math.exp %66 : vector<32x32xf32>
    %cst_28 = arith.constant 1.000000e+00 : f32
    %68 = vector.broadcast %cst_28 : f32 to vector<32x32xf32>
    %69 = arith.addf %68, %67 : vector<32x32xf32>
    %70 = tpu.reciprocal %69 {approx = true} : vector<32x32xf32> -> vector<32x32xf32>
    %71 = tpu.concatenate %32, %70 in 1 : vector<32x32xf32>, vector<32x32xf32> -> vector<32x64xf32>
    %c0_29 = arith.constant 0 : index
    %c0_30 = arith.constant 0 : index
    %72 = vector.load %arg4[%c0_29, %c0_30] : memref<32x64xf32, #tpu.memory_space<vmem>>, vector<32x64xf32>
    tpu.vector_store %arg4[%c0_29, %c0_30], %71 {strides = array<i32>} : memref<32x64xf32, #tpu.memory_space<vmem>>, vector<32x64xf32>,
    return
  }
  func.func @transform_0(%arg0: i32) -> (i32, i32) {
    %c0_i32 = arith.constant 0 : i32
    %c0_i32_0 = arith.constant 0 : i32
    return %arg0, %c0_i32 : i32, i32
  }
  func.func @transform_1(%arg0: i32) -> (i32, i32, i32) {
    %c0_i32 = arith.constant 0 : i32
    %c0_i32_0 = arith.constant 0 : i32
    %c0_i32_1 = arith.constant 0 : i32
    %c0_i32_2 = arith.constant 0 : i32
    return %c0_i32, %c0_i32_0, %c0_i32_1 : i32, i32, i32
  }
  func.func @transform_2(%arg0: i32) -> (i32, i32) {
    %c0_i32 = arith.constant 0 : i32
    %c0_i32_0 = arith.constant 0 : i32
    %c0_i32_1 = arith.constant 0 : i32
    return %c0_i32, %c0_i32_0 : i32, i32
  }
  func.func @transform_3(%arg0: i32) -> (i32, i32) {
    %c0_i32 = arith.constant 0 : i32
    %c0_i32_0 = arith.constant 0 : i32
    return %arg0, %c0_i32 : i32, i32
  }
}

</mosaic_0001>

<llo_original>
// kernel: tpu_custom_call.1
$region0: #{tpu_custom_call.1}
  #allocation0 [shape = 'u32[]', space=smem, size = 0x4, offset = 0x4, fixed_abs, tag = 'smem constant byte address 0x4 - core index']
  #allocation1 [shape = 'u32[144,128]{1,0:T(1,128)}', space=vmem, size = 0x12000, scoped, tag = 'internal scratch']
  %s0 = inlined_call_operand.vmem [shape: f32[256,48], index: 0, kind: input, shape index: {}]
  %s1 = inlined_call_operand.vmem [shape: bf16[6,64,64], index: 1, kind: input, shape index: {}]
  %s2 = inlined_call_operand.vmem [shape: f32[6,64], index: 2, kind: input, shape index: {}]
  %s3 = inlined_call_operand.vmem [shape: f32[256,64], index: 3, kind: output, shape index: {}]
  %s4 = sld [smem:[#allocation0]]
  $region45: #{tpu_custom_call.1} parent=0
    _
  %s6 = ssub.s32 1, %s4
  %s7 = scalar_select 0, %s6, %s4
  loop: start=0, step=1, limit=10
  $region2: #{tpu_custom_call.1} parent=0 // loop_pre_header
    _
  $region3: #{tpu_custom_call.1} parent=0 // loop_header
    %s9 = sphi 0, %s13
    %p10 = scmp.ge.s32.totalorder %s9, 10
    %s19 = sphi 0, %s21
    %s22 = sphi 0, %s19
    %s23 = sphi 0, %s22
    %s39 = sphi 0, %s23
    %s43 = sphi 0, %s43
    %s45 = sphi 0, %s43
    %s46 = sphi 0, %s45
    %s60 = sphi 0, %s46
    %s64 = sphi 0, %s64
    %s66 = sphi 0, %s64
    %s67 = sphi 0, %s66
    %s81 = sphi 0, %s67
    %s87 = sphi 0, %s89
    %s90 = sphi 0, %s87
    %s91 = sphi 0, %s90
    %s107 = sphi 0, %s91
  $region4: #{tpu_custom_call.1} parent=0 // loop_header_branch
    %12 = sbr.rel (%p10) target = $region8
  $region5: #{tpu_custom_call.1} parent=0 // loop_body
    %s14 = ssub.s32 %s9, 1
    %s15 = ssub.s32 %s9, 2
    %s16 = sadd.s32 %s9, 1
    %s17 = ssub.s32 %s9, %s16
    %p18 = scmp.eq.s32.totalorder %s17, 0
    %s20 = sadd.s32 %s19, 1
    %s21 = scalar_select %p18, %s19, %s20
    %p24 = pneg %p18
    %p25 = scmp.eq.s32.totalorder %s9, 7
    %p26 = por %p24, %p25
    %p27 = scmp.ne.s32.totalorder %s19, %s22
    %p28 = scmp.eq.s32.totalorder %s9, 0
    %p29 = por %p27, %p28
    %p30 = scmp.ne.s32.totalorder %s19, %s22
    %p31 = scmp.eq.s32.totalorder %s14, 7
    %p32 = por %p30, %p31
    %p33 = scmp.ne.s32.totalorder %s22, %s23
    %p34 = scmp.eq.s32.totalorder %s14, 0
    %p35 = por %p33, %p34
    %p36 = scmp.ne.s32.totalorder %s22, %s23
    %p37 = scmp.eq.s32.totalorder %s15, 7
    %p38 = por %p36, %p37
    %p40 = scmp.ne.s32.totalorder %s23, %s39
    %p41 = scmp.eq.s32.totalorder %s15, 0
    %p42 = por %p40, %p41
    %s44 = sadd.s32 %s43, 1
    %p47 = scmp.eq.s32.totalorder %s9, 7
    %p48 = scmp.ne.s32.totalorder %s43, %s45
    %p49 = scmp.eq.s32.totalorder %s9, 0
    %p50 = por %p48, %p49
    %p51 = scmp.ne.s32.totalorder %s43, %s45
    %p52 = scmp.eq.s32.totalorder %s14, 7
    %p53 = por %p51, %p52
    %p54 = scmp.ne.s32.totalorder %s45, %s46
    %p55 = scmp.eq.s32.totalorder %s14, 0
    %p56 = por %p54, %p55
    %p57 = scmp.ne.s32.totalorder %s45, %s46
    %p58 = scmp.eq.s32.totalorder %s15, 7
    %p59 = por %p57, %p58
    %p61 = scmp.ne.s32.totalorder %s46, %s60
    %p62 = scmp.eq.s32.totalorder %s15, 0
    %p63 = por %p61, %p62
    %s65 = sadd.s32 %s64, 1
    %p68 = scmp.eq.s32.totalorder %s9, 7
    %p69 = scmp.ne.s32.totalorder %s64, %s66
    %p70 = scmp.eq.s32.totalorder %s9, 0
    %p71 = por %p69, %p70
    %p72 = scmp.ne.s32.totalorder %s64, %s66
    %p73 = scmp.eq.s32.totalorder %s14, 7
    %p74 = por %p72, %p73
    %p75 = scmp.ne.s32.totalorder %s66, %s67
    %p76 = scmp.eq.s32.totalorder %s14, 0
    %p77 = por %p75, %p76
    %p78 = scmp.ne.s32.totalorder %s66, %s67
    %p79 = scmp.eq.s32.totalorder %s15, 7
    %p80 = por %p78, %p79
    %p82 = scmp.ne.s32.totalorder %s67, %s81
    %p83 = scmp.eq.s32.totalorder %s15, 0
    %p84 = por %p82, %p83
    %s85 = ssub.s32 %s9, %s16
    %p86 = scmp.eq.s32.totalorder %s85, 0
    %s88 = sadd.s32 %s87, 1
    %s89 = scalar_select %p86, %s87, %s88
    %p92 = pneg %p86
    %p93 = scmp.eq.s32.totalorder %s9, 7
    %p94 = por %p92, %p93
    %p95 = scmp.ne.s32.totalorder %s87, %s90
    %p96 = scmp.eq.s32.totalorder %s9, 0
    %p97 = por %p95, %p96
    %p98 = scmp.ne.s32.totalorder %s87, %s90
    %p99 = scmp.eq.s32.totalorder %s14, 7
    %p100 = por %p98, %p99
    %p101 = scmp.ne.s32.totalorder %s90, %s91
    %p102 = scmp.eq.s32.totalorder %s14, 0
    %p103 = por %p101, %p102
    %p104 = scmp.ne.s32.totalorder %s90, %s91
    %p105 = scmp.eq.s32.totalorder %s15, 7
    %p106 = por %p104, %p105
    %p108 = scmp.ne.s32.totalorder %s91, %s107
    %p109 = scmp.eq.s32.totalorder %s15, 0
    %p110 = por %p108, %p109
    %p111 = scmp.le.s32.totalorder 1, %s9
    %p112 = scmp.lt.s32.totalorder %s9, 9
    %p113 = pnand %p111, %p112
    %p114 = pneg %p113
    // Predicated region
    $region9: #{tpu_custom_call.1} parent=5 // pred_check
      _
    $region10: #{tpu_custom_call.1} parent=5 // pred_check_branch
      %116 = sbr.rel (%p113) target = $region12
    $region11: #{tpu_custom_call.1} parent=5 // pred_region
      %s117 = ssub.s32 %s9, 1
      // Predicated region
      $region13: #{tpu_custom_call.1} parent=11 // pred_check
        %p118 = pneg %p56
      $region14: #{tpu_custom_call.1} parent=11 // pred_check_branch
        %120 = sbr.rel (%p118) target = $region16
      $region15: #{tpu_custom_call.1} parent=11 // pred_region
        _
      $region16: #{tpu_custom_call.1} parent=11 // pred_fallthru
        _
      // Predicated region
      $region17: #{tpu_custom_call.1} parent=11 // pred_check
        %p121 = pneg %p77
      $region18: #{tpu_custom_call.1} parent=11 // pred_check_branch
        %123 = sbr.rel (%p121) target = $region20
      $region19: #{tpu_custom_call.1} parent=11 // pred_region
        _
      $region20: #{tpu_custom_call.1} parent=11 // pred_fallthru
        _
    $region12: #{tpu_custom_call.1} parent=5 // pred_fallthru
      _
    %p124 = scmp.lt.s32.totalorder %s9, 8
    // Predicated region
    $region21: #{tpu_custom_call.1} parent=5 // pred_check
      %p125 = pneg %p124
    $region22: #{tpu_custom_call.1} parent=5 // pred_check_branch
      %127 = sbr.rel (%p125) target = $region24
    $region23: #{tpu_custom_call.1} parent=5 // pred_region
      // Predicated region
      $region25: #{tpu_custom_call.1} parent=23 // pred_check
        %p128 = pneg %p29
      $region26: #{tpu_custom_call.1} parent=23 // pred_check_branch
        %130 = sbr.rel (%p128) target = $region28
      $region27: #{tpu_custom_call.1} parent=23 // pred_region
        %s131 = smul.u32 4, %s9
        %p132 = scmp.lt.s32.totalorder %s131, 31
        %s133 = scalar_select %p132, %s131, 31
        %s134 = smul.addr %s133, 8
        %s135 = scalar_lea.vmem %s0, %s134
        %s136 = smul.u32 4, %s9
      $region28: #{tpu_custom_call.1} parent=23 // pred_fallthru
        _
    $region24: #{tpu_custom_call.1} parent=5 // pred_fallthru
      _
    %p137 = scmp.le.s32.totalorder 1, %s9
    %p138 = scmp.lt.s32.totalorder %s9, 9
    %p139 = pnand %p137, %p138
    %p140 = pneg %p139
    // Predicated region
    $region29: #{tpu_custom_call.1} parent=5 // pred_check
      _
    $region30: #{tpu_custom_call.1} parent=5 // pred_check_branch
      %142 = sbr.rel (%p139) target = $region32
    $region31: #{tpu_custom_call.1} parent=5 // pred_region
      %s143 = ssub.s32 %s9, 1
      %s144 = smul.u32 4, %s14
      %p145 = scmp.lt.s32.totalorder %s144, 31
      %s146 = scalar_select %p145, %s144, 31
      %s147 = smul.addr %s146, 8
      %s148 = scalar_lea.vmem %s0, %s147
      %p149 = pneg %p35
      %p150 = pneg %p32
      %p151 = pneg %p56
      %p152 = pneg %p53
      %p153 = pneg %p77
      %p154 = pneg %p74
      %p155 = pneg %p103
      %p156 = pneg %p100
      %s157 = smul.u32 4, %s14
      %p158 = scmp.lt.s32.totalorder %s157, 31
      %s159 = scalar_select %p158, %s157, 31
      %s160 = smul.addr %s159, 8
      %s161 = scalar_lea.vmem %s3, %s160
      %s162 = smul.u32 4, %s14
      %p163 = scmp.lt.s32.totalorder %s162, 31
      %s164 = scalar_select %p163, %s162, 31
      %s165 = smul.addr %s164, 8
      %s166 = scalar_lea.vmem %s0, %s165
      %s167 = smul.u32 4, %s14
      %s168 = smul.u32 4, %s14
      %p169 = scmp.lt.s32.totalorder %s168, 31
      %s170 = scalar_select %p169, %s168, 31
      %s171 = smul.addr %s170, 8
      %s172 = scalar_lea.vmem %s3, %s171
      %s173 = smul.u32 4, %s14
      %v175 = vld [vmem:[%s166] sm:$0xff]
      %v176 = vld [vmem:[%s166 + $0x8] sm:$0xff]
      %v177 = vld [vmem:[%s166 + $0x10] sm:$0xff]
      %v178 = vld [vmem:[%s166 + $0x18] sm:$0xff]
      %v179 = vld [vmem:[%s2] sm:$0x3f]
      %v180 = vld [vmem:[%s1] sm:$0xf]
      %v181 = vld [vmem:[%s1 + $0x4] sm:$0xf]
      %v182 = vld [vmem:[%s1 + $0x8] sm:$0xf]
      %v183 = vld [vmem:[%s1 + $0xc] sm:$0xf]
      %v184 = vpack.c.bf16 %v176, %v175
      %v185 = vpack.c.bf16 %v178, %v177
      %v186 = vlaneseq
      %v187 = vshrl.u32 %v186, 7
      %v188 = vsub.s32 0, %v187
      %v189 = vrot.slane %v179, %v188
      %v194 = vunpack.c.l.b16 %v180
      %v195 = vunpack.c.l.b16 %v181
      %v196 = vunpack.c.l.b16 %v182
      %v197 = vunpack.c.l.b16 %v183
      %v198 = vpack.c.b16 %v195, %v194
      %v199 = vpack.c.b16 %v197, %v196
      %vm202 = vcmask 261120
      %v204 = vsel %vm202, %v184, 0
      %v207 = vsel %vm202, %v185, 0
      %209 = vmatprep.subr.bf16.mxu0 0
      %210 = vmatpush1.bf16.msra.mxu0 %v198
      %211 = vmatprep.subr.bf16.mxu0 0
      %212 = vmatpush1.bf16.msra.mxu0 %v199
      %213 = vmatprep.subr.bf16.mxu0 0
      %214 = vmatpush1.bf16.msra.mxu0 0
      %215 = vmatprep.subr.bf16.mxu0 0
      %216 = vmatpush1.bf16.msra.mxu0 0
      %217 = vmatprep.subr.bf16.mxu0 0
      %218 = vmatpush1.bf16.msra.mxu0 0
      %219 = vmatprep.subr.bf16.mxu0 0
      %220 = vmatpush1.bf16.msra.mxu0 0
      %221 = vmatprep.subr.bf16.mxu0 0
      %222 = vmatpush1.bf16.msra.mxu0 0
      %223 = vmatprep.subr.bf16.mxu0 0
      %224 = vmatpush1.bf16.msra.mxu0 0
      %225 = vmatprep.subr.bf16.mxu0 0
      %226 = vmatpush1.bf16.msra.mxu0 0
      %227 = vmatprep.subr.bf16.mxu0 0
      %228 = vmatpush1.bf16.msra.mxu0 0
      %229 = vmatprep.subr.bf16.mxu0 0
      %230 = vmatpush1.bf16.msra.mxu0 0
      %231 = vmatprep.subr.bf16.mxu0 0
      %232 = vmatpush1.bf16.msra.mxu0 0
      %233 = vmatprep.subr.bf16.mxu0 0
      %234 = vmatpush1.bf16.msra.mxu0 0
      %235 = vmatprep.subr.bf16.mxu0 0
      %236 = vmatpush1.bf16.msra.mxu0 0
      %237 = vmatprep.subr.bf16.mxu0 0
      %238 = vmatpush1.bf16.msra.mxu0 0
      %239 = vmatprep.subr.bf16.mxu0 0
      %240 = vmatpush1.bf16.msra.mxu0 0
      %241 = vmatprep.mubr.bf16.mxu0 0
      %242 = vmatmul.mubr.bf16.gmra.mrb[0].mxu0 %v204
      %v243 = vpop.f32.mrb[0].mxu0
      %v244 = vadd.f32 %v189, %v243
      %v245 = vpop.f32.mrb[0].mxu0
      %v246 = vpop.f32.mrb[0].mxu0
      %v247 = vadd.f32 %v189, %v246
      %v248 = vpop.f32.mrb[0].mxu0
      %249 = vmatprep.mubr.bf16.mxu0 0
      %250 = vmatmul.mubr.bf16.gmra.mrb[0].mxu0 %v207
      %v251 = vpop.f32.mrb[0].mxu0
      %v252 = vadd.f32 %v189, %v251
      %v253 = vpop.f32.mrb[0].mxu0
      %v254 = vpop.f32.mrb[0].mxu0
      %v255 = vadd.f32 %v189, %v254
      %v256 = vpop.f32.mrb[0].mxu0
      %257 = vdwg.mxu0
      %v258 = vmax.f32 %v244, 0.0
      %v259 = vmax.f32 %v247, 0.0
      %v260 = vmax.f32 %v252, 0.0
      %v261 = vmax.f32 %v255, 0.0
      %s262 = scalar_lea.vmem %s1, 32
      %v263 = vld [vmem:[%s262] sm:$0xf]
      %v264 = vld [vmem:[%s262 + $0x4] sm:$0xf]
      %v265 = vld [vmem:[%s262 + $0x8] sm:$0xf]
      %v266 = vld [vmem:[%s262 + $0xc] sm:$0xf]
      %v267 = vld [vmem:[%s262 + $0x10] sm:$0xf]
      %v268 = vld [vmem:[%s262 + $0x14] sm:$0xf]
      %v269 = vld [vmem:[%s262 + $0x18] sm:$0xf]
      %v270 = vld [vmem:[%s262 + $0x1c] sm:$0xf]
      %v271 = vpack.c.bf16 %v259, %v258
      %v272 = vpack.c.bf16 %v261, %v260
      %v273 = vlaneseq
      %v274 = vshrl.u32 %v273, 7
      %v275 = vsub.s32 1, %v274
      %v276 = vrot.slane %v179, %v275
      %v285 = vunpack.c.l.b16 %v263
      %v286 = vunpack.c.l.b16 %v264
      %v287 = vunpack.c.l.b16 %v265
      %v288 = vunpack.c.l.b16 %v266
      %v289 = vunpack.c.l.b16 %v267
      %v290 = vunpack.c.l.b16 %v268
      %v291 = vunpack.c.l.b16 %v269
      %v292 = vunpack.c.l.b16 %v270
      %v293 = vpack.c.b16 %v286, %v285
      %v294 = vpack.c.b16 %v288, %v287
      %v295 = vpack.c.b16 %v290, %v289
      %v296 = vpack.c.b16 %v292, %v291
      %vm301 = vcmask 523264
      %v303 = vsel %vm301, %v271, 0
      %v306 = vsel %vm301, %v272, 0
      %308 = vmatprep.subr.bf16.mxu0 0
      %309 = vmatpush1.bf16.msra.mxu0 %v293
      %310 = vmatprep.subr.bf16.mxu0 0
      %311 = vmatpush1.bf16.msra.mxu0 %v294
      %312 = vmatprep.subr.bf16.mxu0 0
      %313 = vmatpush1.bf16.msra.mxu0 %v295
      %314 = vmatprep.subr.bf16.mxu0 0
      %315 = vmatpush1.bf16.msra.mxu0 %v296
      %316 = vmatprep.subr.bf16.mxu0 0
      %317 = vmatpush1.bf16.msra.mxu0 0
      %318 = vmatprep.subr.bf16.mxu0 0
      %319 = vmatpush1.bf16.msra.mxu0 0
      %320 = vmatprep.subr.bf16.mxu0 0
      %321 = vmatpush1.bf16.msra.mxu0 0
      %322 = vmatprep.subr.bf16.mxu0 0
      %323 = vmatpush1.bf16.msra.mxu0 0
      %324 = vmatprep.subr.bf16.mxu0 0
      %325 = vmatpush1.bf16.msra.mxu0 0
      %326 = vmatprep.subr.bf16.mxu0 0
      %327 = vmatpush1.bf16.msra.mxu0 0
      %328 = vmatprep.subr.bf16.mxu0 0
      %329 = vmatpush1.bf16.msra.mxu0 0
      %330 = vmatprep.subr.bf16.mxu0 0
      %331 = vmatpush1.bf16.msra.mxu0 0
      %332 = vmatprep.subr.bf16.mxu0 0
      %333 = vmatpush1.bf16.msra.mxu0 0
      %334 = vmatprep.subr.bf16.mxu0 0
      %335 = vmatpush1.bf16.msra.mxu0 0
      %336 = vmatprep.subr.bf16.mxu0 0
      %337 = vmatpush1.bf16.msra.mxu0 0
      %338 = vmatprep.subr.bf16.mxu0 0
      %339 = vmatpush1.bf16.msra.mxu0 0
      %340 = vmatprep.mubr.bf16.mxu0 0
      %341 = vmatmul.mubr.bf16.gmra.mrb[0].mxu0 %v303
      %v342 = vpop.f32.mrb[0].mxu0
      %v343 = vadd.f32 %v276, %v342
      %v344 = vpop.f32.mrb[0].mxu0
      %v345 = vpop.f32.mrb[0].mxu0
      %v346 = vadd.f32 %v276, %v345
      %v347 = vpop.f32.mrb[0].mxu0
      %348 = vmatprep.mubr.bf16.mxu0 0
      %349 = vmatmul.mubr.bf16.gmra.mrb[0].mxu0 %v306
      %v350 = vpop.f32.mrb[0].mxu0
      %v351 = vadd.f32 %v276, %v350
      %v352 = vpop.f32.mrb[0].mxu0
      %v353 = vpop.f32.mrb[0].mxu0
      %v354 = vadd.f32 %v276, %v353
      %v355 = vpop.f32.mrb[0].mxu0
      %356 = vdwg.mxu0
      %v357 = vsub.f32 0.0, %v343
      %v358 = vsub.f32 0.0, %v346
      %v359 = vsub.f32 0.0, %v351
      %v360 = vsub.f32 0.0, %v354
      %v361 = vmul.f32 %v357, 1.442695
      %v362 = vpow.pop %v361
      %v363 = vmul.f32 %v358, 1.442695
      %v364 = vpow.pop %v363
      %v365 = vmul.f32 %v359, 1.442695
      %v366 = vpow.pop %v365
      %v367 = vmul.f32 %v360, 1.442695
      %v368 = vpow.pop %v367
      %v369 = vadd.f32 %v362, 1.0
      %v370 = vadd.f32 %v364, 1.0
      %v371 = vadd.f32 %v366, 1.0
      %v372 = vadd.f32 %v368, 1.0
      %v373 = vrcp.pop %v369
      %v374 = vrcp.pop %v370
      %v375 = vrcp.pop %v371
      %v376 = vrcp.pop %v372
      %s377 = scalar_lea.vmem %s1, 64
      %v378 = vld [vmem:[%s377] sm:$0xf]
      %v379 = vld [vmem:[%s377 + $0x4] sm:$0xf]
      %v380 = vld [vmem:[%s377 + $0x8] sm:$0xf]
      %v381 = vld [vmem:[%s377 + $0xc] sm:$0xf]
      %v382 = vpack.c.bf16 %v374, %v373
      %v383 = vpack.c.bf16 %v376, %v375
      %v384 = vlaneseq
      %v385 = vshrl.u32 %v384, 7
      %v386 = vsub.s32 2, %v385
      %v387 = vrot.slane %v179, %v386
      %v392 = vunpack.c.l.b16 %v378
      %v393 = vunpack.c.l.b16 %v379
      %v394 = vunpack.c.l.b16 %v380
      %v395 = vunpack.c.l.b16 %v381
      %v396 = vpack.c.b16 %v393, %v392
      %v397 = vpack.c.b16 %v395, %v394
      %v401 = vsel %vm202, %v382, 0
      %v404 = vsel %vm202, %v383, 0
      %406 = vmatprep.subr.bf16.mxu0 0
      %407 = vmatpush1.bf16.msra.mxu0 %v396
      %408 = vmatprep.subr.bf16.mxu0 0
      %409 = vmatpush1.bf16.msra.mxu0 %v397
      %410 = vmatprep.subr.bf16.mxu0 0
      %411 = vmatpush1.bf16.msra.mxu0 0
      %412 = vmatprep.subr.bf16.mxu0 0
      %413 = vmatpush1.bf16.msra.mxu0 0
      %414 = vmatprep.subr.bf16.mxu0 0
      %415 = vmatpush1.bf16.msra.mxu0 0
      %416 = vmatprep.subr.bf16.mxu0 0
      %417 = vmatpush1.bf16.msra.mxu0 0
      %418 = vmatprep.subr.bf16.mxu0 0
      %419 = vmatpush1.bf16.msra.mxu0 0
      %420 = vmatprep.subr.bf16.mxu0 0
      %421 = vmatpush1.bf16.msra.mxu0 0
      %422 = vmatprep.subr.bf16.mxu0 0
      %423 = vmatpush1.bf16.msra.mxu0 0
      %424 = vmatprep.subr.bf16.mxu0 0
      %425 = vmatpush1.bf16.msra.mxu0 0
      %426 = vmatprep.subr.bf16.mxu0 0
      %427 = vmatpush1.bf16.msra.mxu0 0
      %428 = vmatprep.subr.bf16.mxu0 0
      %429 = vmatpush1.bf16.msra.mxu0 0
      %430 = vmatprep.subr.bf16.mxu0 0
      %431 = vmatpush1.bf16.msra.mxu0 0
      %432 = vmatprep.subr.bf16.mxu0 0
      %433 = vmatpush1.bf16.msra.mxu0 0
      %434 = vmatprep.subr.bf16.mxu0 0
      %435 = vmatpush1.bf16.msra.mxu0 0
      %436 = vmatprep.subr.bf16.mxu0 0
      %437 = vmatpush1.bf16.msra.mxu0 0
      %438 = vmatprep.mubr.bf16.mxu0 0
      %439 = vmatmul.mubr.bf16.gmra.mrb[0].mxu0 %v401
      %v440 = vpop.f32.mrb[0].mxu0
      %v441 = vadd.f32 %v387, %v440
      %v442 = vpop.f32.mrb[0].mxu0
      %v443 = vpop.f32.mrb[0].mxu0
      %v444 = vadd.f32 %v387, %v443
      %v445 = vpop.f32.mrb[0].mxu0
      %446 = vmatprep.mubr.bf16.mxu0 0
      %447 = vmatmul.mubr.bf16.gmra.mrb[0].mxu0 %v404
      %v448 = vpop.f32.mrb[0].mxu0
      %v449 = vadd.f32 %v387, %v448
      %v450 = vpop.f32.mrb[0].mxu0
      %v451 = vpop.f32.mrb[0].mxu0
      %v452 = vadd.f32 %v387, %v451
      %v453 = vpop.f32.mrb[0].mxu0
      %454 = vdwg.mxu0
      %v455 = vmul.f32 %v441, 0.5
      %v456 = vmul.f32 %v444, 0.5
      %v457 = vmul.f32 %v449, 0.5
      %v458 = vmul.f32 %v452, 0.5
      %v459 = vmul.f32 %v455, 1.442695
      %v460 = vpow.pop %v459
      %v461 = vmul.f32 %v456, 1.442695
      %v462 = vpow.pop %v461
      %v463 = vmul.f32 %v457, 1.442695
      %v464 = vpow.pop %v463
      %v465 = vmul.f32 %v458, 1.442695
      %v466 = vpow.pop %v465
      %471 = vrot.lane.b32.xlu0 %v460, 16
      %v472 = vpop.permute.xlu0 %471
      %473 = vrot.lane.b32.xlu0 %v462, 16
      %v474 = vpop.permute.xlu0 %473
      %475 = vrot.lane.b32.xlu0 %v464, 16
      %v476 = vpop.permute.xlu0 %475
      %477 = vrot.lane.b32.xlu0 %v466, 16
      %v478 = vpop.permute.xlu0 %477
      %v483 = vmul.f32 %v175, %v472
      %v484 = vmul.f32 %v176, %v474
      %v485 = vmul.f32 %v177, %v476
      %v486 = vmul.f32 %v178, %v478
      %491 = vrot.lane.b32.xlu0 %v483, 96
      %v492 = vpop.permute.xlu0 %491
      %493 = vrot.lane.b32.xlu0 %v484, 96
      %v494 = vpop.permute.xlu0 %493
      %495 = vrot.lane.b32.xlu0 %v485, 96
      %v496 = vpop.permute.xlu0 %495
      %497 = vrot.lane.b32.xlu0 %v486, 96
      %v498 = vpop.permute.xlu0 %497
      %v503 = vadd.f32 %v441, %v492
      %v504 = vadd.f32 %v444, %v494
      %v505 = vadd.f32 %v449, %v496
      %v506 = vadd.f32 %v452, %v498
      %s507 = scalar_lea.vmem %s1, 96
      %v508 = vld [vmem:[%s507] sm:$0xf]
      %v509 = vld [vmem:[%s507 + $0x4] sm:$0xf]
      %v510 = vpack.c.bf16 %v504, %v503
      %v511 = vpack.c.bf16 %v506, %v505
      %v512 = vlaneseq
      %v513 = vshrl.u32 %v512, 7
      %v514 = vsub.s32 3, %v513
      %v515 = vrot.slane %v179, %v514
      %v518 = vunpack.c.l.b16 %v508
      %v519 = vunpack.c.l.b16 %v509
      %v520 = vpack.c.b16 %v519, %v518
      %vm522 = vcmask 130048
      %v524 = vsel %vm522, %v510, 0
      %v527 = vsel %vm522, %v511, 0
      %529 = vmatprep.subr.bf16.mxu0 0
      %530 = vmatpush1.bf16.msra.mxu0 %v520
      %531 = vmatprep.subr.bf16.mxu0 0
      %532 = vmatpush1.bf16.msra.mxu0 0
      %533 = vmatprep.subr.bf16.mxu0 0
      %534 = vmatpush1.bf16.msra.mxu0 0
      %535 = vmatprep.subr.bf16.mxu0 0
      %536 = vmatpush1.bf16.msra.mxu0 0
      %537 = vmatprep.subr.bf16.mxu0 0
      %538 = vmatpush1.bf16.msra.mxu0 0
      %539 = vmatprep.subr.bf16.mxu0 0
      %540 = vmatpush1.bf16.msra.mxu0 0
      %541 = vmatprep.subr.bf16.mxu0 0
      %542 = vmatpush1.bf16.msra.mxu0 0
      %543 = vmatprep.subr.bf16.mxu0 0
      %544 = vmatpush1.bf16.msra.mxu0 0
      %545 = vmatprep.subr.bf16.mxu0 0
      %546 = vmatpush1.bf16.msra.mxu0 0
      %547 = vmatprep.subr.bf16.mxu0 0
      %548 = vmatpush1.bf16.msra.mxu0 0
      %549 = vmatprep.subr.bf16.mxu0 0
      %550 = vmatpush1.bf16.msra.mxu0 0
      %551 = vmatprep.subr.bf16.mxu0 0
      %552 = vmatpush1.bf16.msra.mxu0 0
      %553 = vmatprep.subr.bf16.mxu0 0
      %554 = vmatpush1.bf16.msra.mxu0 0
      %555 = vmatprep.subr.bf16.mxu0 0
      %556 = vmatpush1.bf16.msra.mxu0 0
      %557 = vmatprep.subr.bf16.mxu0 0
      %558 = vmatpush1.bf16.msra.mxu0 0
      %559 = vmatprep.subr.bf16.mxu0 0
      %560 = vmatpush1.bf16.msra.mxu0 0
      %561 = vmatprep.mubr.bf16.mxu0 0
      %562 = vmatmul.mubr.bf16.gmra.mrb[0].mxu0 %v524
      %v563 = vpop.f32.mrb[0].mxu0
      %v564 = vadd.f32 %v515, %v563
      %v565 = vpop.f32.mrb[0].mxu0
      %v566 = vpop.f32.mrb[0].mxu0
      %v567 = vadd.f32 %v515, %v566
      %v568 = vpop.f32.mrb[0].mxu0
      %569 = vmatprep.mubr.bf16.mxu0 0
      %570 = vmatmul.mubr.bf16.gmra.mrb[0].mxu0 %v527
      %v571 = vpop.f32.mrb[0].mxu0
      %v572 = vadd.f32 %v515, %v571
      %v573 = vpop.f32.mrb[0].mxu0
      %v574 = vpop.f32.mrb[0].mxu0
      %v575 = vadd.f32 %v515, %v574
      %v576 = vpop.f32.mrb[0].mxu0
      %577 = vdwg.mxu0
      %v578 = vmax.f32 %v564, 0.0
      %v579 = vmax.f32 %v567, 0.0
      %v580 = vmax.f32 %v572, 0.0
      %v581 = vmax.f32 %v575, 0.0
      %s582 = scalar_lea.vmem %s1, 128
      %v583 = vld [vmem:[%s582] sm:$0xf]
      %v584 = vld [vmem:[%s582 + $0x4] sm:$0xf]
      %v585 = vld [vmem:[%s582 + $0x8] sm:$0xf]
      %v586 = vld [vmem:[%s582 + $0xc] sm:$0xf]
      %v587 = vpack.c.bf16 %v579, %v578
      %v588 = vpack.c.bf16 %v581, %v580
      %v589 = vlaneseq
      %v590 = vshrl.u32 %v589, 7
      %v591 = vsub.s32 4, %v590
      %v592 = vrot.slane %v179, %v591
      %v597 = vunpack.c.l.b16 %v583
      %v598 = vunpack.c.l.b16 %v584
      %v599 = vunpack.c.l.b16 %v585
      %v600 = vunpack.c.l.b16 %v586
      %v601 = vpack.c.b16 %v598, %v597
      %v602 = vpack.c.b16 %v600, %v599
      %v606 = vsel %vm202, %v587, 0
      %v609 = vsel %vm202, %v588, 0
      %611 = vmatprep.subr.bf16.mxu0 0
      %612 = vmatpush1.bf16.msra.mxu0 %v601
      %613 = vmatprep.subr.bf16.mxu0 0
      %614 = vmatpush1.bf16.msra.mxu0 %v602
      %615 = vmatprep.subr.bf16.mxu0 0
      %616 = vmatpush1.bf16.msra.mxu0 0
      %617 = vmatprep.subr.bf16.mxu0 0
      %618 = vmatpush1.bf16.msra.mxu0 0
      %619 = vmatprep.subr.bf16.mxu0 0
      %620 = vmatpush1.bf16.msra.mxu0 0
      %621 = vmatprep.subr.bf16.mxu0 0
      %622 = vmatpush1.bf16.msra.mxu0 0
      %623 = vmatprep.subr.bf16.mxu0 0
      %624 = vmatpush1.bf16.msra.mxu0 0
      %625 = vmatprep.subr.bf16.mxu0 0
      %626 = vmatpush1.bf16.msra.mxu0 0
      %627 = vmatprep.subr.bf16.mxu0 0
      %628 = vmatpush1.bf16.msra.mxu0 0
      %629 = vmatprep.subr.bf16.mxu0 0
      %630 = vmatpush1.bf16.msra.mxu0 0
      %631 = vmatprep.subr.bf16.mxu0 0
      %632 = vmatpush1.bf16.msra.mxu0 0
      %633 = vmatprep.subr.bf16.mxu0 0
      %634 = vmatpush1.bf16.msra.mxu0 0
      %635 = vmatprep.subr.bf16.mxu0 0
      %636 = vmatpush1.bf16.msra.mxu0 0
      %637 = vmatprep.subr.bf16.mxu0 0
      %638 = vmatpush1.bf16.msra.mxu0 0
      %639 = vmatprep.subr.bf16.mxu0 0
      %640 = vmatpush1.bf16.msra.mxu0 0
      %641 = vmatprep.subr.bf16.mxu0 0
      %642 = vmatpush1.bf16.msra.mxu0 0
      %643 = vmatprep.mubr.bf16.mxu0 0
      %644 = vmatmul.mubr.bf16.gmra.mrb[0].mxu0 %v606
      %v645 = vpop.f32.mrb[0].mxu0
      %v646 = vadd.f32 %v592, %v645
      %v647 = vpop.f32.mrb[0].mxu0
      %v648 = vpop.f32.mrb[0].mxu0
      %v649 = vadd.f32 %v592, %v648
      %v650 = vpop.f32.mrb[0].mxu0
      %651 = vmatprep.mubr.bf16.mxu0 0
      %652 = vmatmul.mubr.bf16.gmra.mrb[0].mxu0 %v609
      %v653 = vpop.f32.mrb[0].mxu0
      %v654 = vadd.f32 %v592, %v653
      %v655 = vpop.f32.mrb[0].mxu0
      %v656 = vpop.f32.mrb[0].mxu0
      %v657 = vadd.f32 %v592, %v656
      %v658 = vpop.f32.mrb[0].mxu0
      %659 = vdwg.mxu0
      %v660 = vmax.f32 %v646, 0.0
      %v661 = vmax.f32 %v649, 0.0
      %v662 = vmax.f32 %v654, 0.0
      %v663 = vmax.f32 %v657, 0.0
      %s664 = scalar_lea.vmem %s1, 160
      %v665 = vld [vmem:[%s664] sm:$0xf]
      %v666 = vld [vmem:[%s664 + $0x4] sm:$0xf]
      %v667 = vld [vmem:[%s664 + $0x8] sm:$0xf]
      %v668 = vld [vmem:[%s664 + $0xc] sm:$0xf]
      %v669 = vld [vmem:[%s664 + $0x10] sm:$0xf]
      %v670 = vld [vmem:[%s664 + $0x14] sm:$0xf]
      %v671 = vld [vmem:[%s664 + $0x18] sm:$0xf]
      %v672 = vld [vmem:[%s664 + $0x1c] sm:$0xf]
      %v673 = vpack.c.bf16 %v661, %v660
      %v674 = vpack.c.bf16 %v663, %v662
      %v675 = vlaneseq
      %v676 = vshrl.u32 %v675, 7
      %v677 = vsub.s32 5, %v676
      %v678 = vrot.slane %v179, %v677
      %v687 = vunpack.c.l.b16 %v665
      %v688 = vunpack.c.l.b16 %v666
      %v689 = vunpack.c.l.b16 %v667
      %v690 = vunpack.c.l.b16 %v668
      %v691 = vunpack.c.l.b16 %v669
      %v692 = vunpack.c.l.b16 %v670
      %v693 = vunpack.c.l.b16 %v671
      %v694 = vunpack.c.l.b16 %v672
      %v695 = vpack.c.b16 %v688, %v687
      %v696 = vpack.c.b16 %v690, %v689
      %v697 = vpack.c.b16 %v692, %v691
      %v698 = vpack.c.b16 %v694, %v693
      %v704 = vsel %vm301, %v673, 0
      %v707 = vsel %vm301, %v674, 0
      %709 = vmatprep.subr.bf16.mxu0 0
      %710 = vmatpush1.bf16.msra.mxu0 %v695
      %711 = vmatprep.subr.bf16.mxu0 0
      %712 = vmatpush1.bf16.msra.mxu0 %v696
      %713 = vmatprep.subr.bf16.mxu0 0
      %714 = vmatpush1.bf16.msra.mxu0 %v697
      %715 = vmatprep.subr.bf16.mxu0 0
      %716 = vmatpush1.bf16.msra.mxu0 %v698
      %717 = vmatprep.subr.bf16.mxu0 0
      %718 = vmatpush1.bf16.msra.mxu0 0
      %719 = vmatprep.subr.bf16.mxu0 0
      %720 = vmatpush1.bf16.msra.mxu0 0
      %721 = vmatprep.subr.bf16.mxu0 0
      %722 = vmatpush1.bf16.msra.mxu0 0
      %723 = vmatprep.subr.bf16.mxu0 0
      %724 = vmatpush1.bf16.msra.mxu0 0
      %725 = vmatprep.subr.bf16.mxu0 0
      %726 = vmatpush1.bf16.msra.mxu0 0
      %727 = vmatprep.subr.bf16.mxu0 0
      %728 = vmatpush1.bf16.msra.mxu0 0
      %729 = vmatprep.subr.bf16.mxu0 0
      %730 = vmatpush1.bf16.msra.mxu0 0
      %731 = vmatprep.subr.bf16.mxu0 0
      %732 = vmatpush1.bf16.msra.mxu0 0
      %733 = vmatprep.subr.bf16.mxu0 0
      %734 = vmatpush1.bf16.msra.mxu0 0
      %735 = vmatprep.subr.bf16.mxu0 0
      %736 = vmatpush1.bf16.msra.mxu0 0
      %737 = vmatprep.subr.bf16.mxu0 0
      %738 = vmatpush1.bf16.msra.mxu0 0
      %739 = vmatprep.subr.bf16.mxu0 0
      %740 = vmatpush1.bf16.msra.mxu0 0
      %741 = vmatprep.mubr.bf16.mxu0 0
      %742 = vmatmul.mubr.bf16.gmra.mrb[0].mxu0 %v704
      %v743 = vpop.f32.mrb[0].mxu0
      %v744 = vadd.f32 %v678, %v743
      %v745 = vpop.f32.mrb[0].mxu0
      %v746 = vpop.f32.mrb[0].mxu0
      %v747 = vadd.f32 %v678, %v746
      %v748 = vpop.f32.mrb[0].mxu0
      %749 = vmatprep.mubr.bf16.mxu0 0
      %750 = vmatmul.mubr.bf16.gmra.mrb[0].mxu0 %v707
      %v751 = vpop.f32.mrb[0].mxu0
      %v752 = vadd.f32 %v678, %v751
      %v753 = vpop.f32.mrb[0].mxu0
      %v754 = vpop.f32.mrb[0].mxu0
      %v755 = vadd.f32 %v678, %v754
      %v756 = vpop.f32.mrb[0].mxu0
      %757 = vdwg.mxu0
      %v758 = vsub.f32 0.0, %v744
      %v759 = vsub.f32 0.0, %v747
      %v760 = vsub.f32 0.0, %v752
      %v761 = vsub.f32 0.0, %v755
      %v762 = vmul.f32 %v758, 1.442695
      %v763 = vpow.pop %v762
      %v764 = vmul.f32 %v759, 1.442695
      %v765 = vpow.pop %v764
      %v766 = vmul.f32 %v760, 1.442695
      %v767 = vpow.pop %v766
      %v768 = vmul.f32 %v761, 1.442695
      %v769 = vpow.pop %v768
      %v770 = vadd.f32 %v763, 1.0
      %v771 = vadd.f32 %v765, 1.0
      %v772 = vadd.f32 %v767, 1.0
      %v773 = vadd.f32 %v769, 1.0
      %v774 = vrcp.pop %v770
      %v775 = vrcp.pop %v771
      %v776 = vrcp.pop %v772
      %v777 = vrcp.pop %v773
      %782 = vrot.lane.b32.xlu0 %v774, 32
      %v783 = vpop.permute.xlu0 %782
      %784 = vrot.lane.b32.xlu0 %v775, 32
      %v785 = vpop.permute.xlu0 %784
      %786 = vrot.lane.b32.xlu0 %v776, 32
      %v787 = vpop.permute.xlu0 %786
      %788 = vrot.lane.b32.xlu0 %v777, 32
      %v789 = vpop.permute.xlu0 %788
      %v794 = vsel %vm202, %v441, %v783
      %v795 = vsel %vm202, %v444, %v785
      %v796 = vsel %vm202, %v449, %v787
      %v797 = vsel %vm202, %v452, %v789
      %798 = vst.msk [vmem:[%s172] sm:$0xff] %vm301, %v794
      %799 = vst.msk [vmem:[%s172 + $0x8] sm:$0xff] %vm301, %v795
      %800 = vst.msk [vmem:[%s172 + $0x10] sm:$0xff] %vm301, %v796
      %801 = vst.msk [vmem:[%s172 + $0x18] sm:$0xff] %vm301, %v797
      %s802 = smul.u32 4, %s14
      %p803 = scmp.lt.s32.totalorder %s802, 31
      %s804 = scalar_select %p803, %s802, 31
      %s805 = smul.addr %s804, 8
      %s806 = scalar_lea.vmem %s3, %s805
      // Predicated region
      $region33: #{tpu_custom_call.1} parent=31 // pred_check
        %p807 = pneg %p100
      $region34: #{tpu_custom_call.1} parent=31 // pred_check_branch
        %809 = sbr.rel (%p807) target = $region36
      $region35: #{tpu_custom_call.1} parent=31 // pred_region
        %s810 = smul.u32 4, %s14
      $region36: #{tpu_custom_call.1} parent=31 // pred_fallthru
        _
    $region32: #{tpu_custom_call.1} parent=5 // pred_fallthru
      _
    %p811 = scmp.le.s32.totalorder 2, %s9
    // Predicated region
    $region37: #{tpu_custom_call.1} parent=5 // pred_check
      %p812 = pneg %p811
    $region38: #{tpu_custom_call.1} parent=5 // pred_check_branch
      %814 = sbr.rel (%p812) target = $region40
    $region39: #{tpu_custom_call.1} parent=5 // pred_region
      %s815 = ssub.s32 %s9, 2
      // Predicated region
      $region41: #{tpu_custom_call.1} parent=39 // pred_check
        %p816 = pneg %p106
      $region42: #{tpu_custom_call.1} parent=39 // pred_check_branch
        %818 = sbr.rel (%p816) target = $region44
      $region43: #{tpu_custom_call.1} parent=39 // pred_region
        %s819 = smul.u32 4, %s15
        %p820 = scmp.lt.s32.totalorder %s819, 31
        %s821 = scalar_select %p820, %s819, 31
        %s822 = smul.addr %s821, 8
        %s823 = scalar_lea.vmem %s3, %s822
      $region44: #{tpu_custom_call.1} parent=39 // pred_fallthru
        _
    $region40: #{tpu_custom_call.1} parent=5 // pred_fallthru
      _
  $region6: #{tpu_custom_call.1} parent=0 // loop_footer
    %s13 = sadd.s32 1, %s9
  $region7: #{tpu_custom_call.1} parent=0 // loop_footer_branch
    %8 = sbr.rel target = $region3
  $region8: #{tpu_custom_call.1} parent=0 // loop_exit
    _

</llo_original>
